<compile_context>
chip_gen: v6e
topology: v6e:2x2x1
jax: 0.10.0
libtpu: 0.0.40
codegen_flags: <defaults>
</compile_context>

<pallas_src>
import functools

import jax
import jax.numpy as jnp
from jax import lax
from jax.experimental import pallas as pl
from jax.experimental.pallas import tpu as pltpu


def _round_up(n, m):
    return ((n + m - 1) // m) * m


def _tpu_props():
    """Best-effort (generation, num_tensorcores, vmem_limit_cap_bytes)."""
    gen = 0
    try:
        kind = jax.devices()[0].device_kind            # e.g. "TPU v6 lite"
        digits = "".join(c if c.isdigit() else " " for c in kind).split()
        if digits:
            gen = int(digits[0])
    except Exception:
        gen = 0
    if gen >= 7:
        return gen, 2, 48 << 20        # v7x: 2 TCs/chip, 64 MiB physical VMEM
    if gen in (5, 6):
        return gen, 1, 96 << 20        # v5e / v6e: 1 TC, 128 MiB VMEM
    return gen, 1, 48 << 20            # unknown / older: conservative


# ----------------------------------------------------------------------------
# Kernels
# ----------------------------------------------------------------------------
def _st_softmax_kernel(x_ref, o_ref, *, index_dtype):
    """Generic path: block (tile_rows, D); one-hot(argmax) over the lane axis."""
    x = x_ref[...]
    d = x.shape[-1]
    m = jnp.max(x, axis=-1, keepdims=True)
    iota = lax.broadcasted_iota(jnp.int32, x.shape, x.ndim - 1).astype(index_dtype)
    big = jnp.asarray(d, index_dtype)                  # > every valid index
    # First index achieving the max (tie-break toward the smallest index,
    # matching torch.argmax / jnp.argmax).
    # TODO(synk): a row containing NaN produces an all-zero output row
    # (x == m is false everywhere); torch.argmax would still pick an index.
    amax = jnp.min(jnp.where(x == m, iota, big), axis=-1, keepdims=True)
    o_ref[...] = (iota == amax).astype(o_ref.dtype)


def _st_softmax_packed_kernel(x_ref, o_ref, *, d, value_dtype, index_dtype):
    """Lane-dense path for d < 128, d a power of two.

    Each block row packs g = 128 // d logical rows ("segments") of length d so
    the last dim is exactly 128 lanes (dense loads / stores).  Per-segment
    max / argmin use a log2(d) doubling reduction built from full-width lane
    rotations.  The per-step "source lane is in my segment" masks are derived
    arithmetically from a single 1-vreg roll probe, so they are correct for
    either rotate direction of pltpu.roll without per-step mask rolls.
    """
    x = x_ref[...]
    if x.dtype != jnp.dtype(value_dtype):
        x = x.astype(value_dtype)
    w = x.shape[-1]                                    # == 128
    log2d = d.bit_length() - 1
    shifts = [1 << s for s in range(log2d)]            # 1, 2, 4, ..., d // 2

    # --- single-vreg lane bookkeeping (int32, one (8, w) vreg) ---------------
    lane = lax.broadcasted_iota(jnp.int32, (8, w), 1)
    seg = lane >> log2d
    # Direction probe: one roll of a 1-vreg iota.  `delta` is the all-equal
    # vector 1 or w-1 depending on whether roll-by-k pulls from lane+k/lane-k.
    delta = (pltpu.roll(lane, 1, axis=1) - lane) & (w - 1)
    conds = []
    for k in shifts:
        src = (lane + k * delta) & (w - 1)             # source lane of roll-by-k
        conds.append(((src >> log2d) == seg)[0:1, :])  # (1, w): broadcasts below
    pos = (lane & (d - 1))[0:1, :].astype(index_dtype)  # (1, w) in-segment pos
    big = jnp.asarray(d, index_dtype)                   # > every valid position

    def seg_shift(v, k, cond):
        # Cyclic shift by k lanes within every aligned length-d segment.
        r1 = pltpu.roll(v, k, axis=1)
        r2 = pltpu.roll(v, (k - d) % w, axis=1)
        return jnp.where(cond, r1, r2)

    # Segmented max: after log2(d) doubling steps every lane holds the max of
    # its own segment.
    m = x
    for k, cond in zip(shifts, conds):
        m = jnp.maximum(m, seg_shift(m, k, cond))

    # Segmented argmax = min position among maximal lanes (tie-break toward the
    # smallest index, matching torch.argmax / jnp.argmax).
    # TODO(synk): a segment containing NaN comes out all-zero (x == m is false
    # everywhere); torch.argmax would still pick an index.
    a = jnp.where(x == m, pos, big)
    for k, cond in zip(shifts, conds):
        a = jnp.minimum(a, seg_shift(a, k, cond))

    o_ref[...] = (pos == a).astype(o_ref.dtype)


# ----------------------------------------------------------------------------
# Wrapper
# ----------------------------------------------------------------------------
def _run_grid(kernel, arr, *, target_block_bytes, num_cores, vmem_cap_bytes):
    rows, width = arr.shape
    itemsize = jnp.dtype(arr.dtype).itemsize
    sub = {4: 8, 2: 16, 1: 32}.get(itemsize, 8)        # sublane pack per dtype
    row_bytes = max(1, width * itemsize)

    # Big row blocks (~target_block_bytes each, multiple of the sublane pack).
    tile_rows = max(sub, (target_block_bytes // row_bytes) // sub * sub)
    tile_rows = min(tile_rows, _round_up(rows, sub))
    if num_cores >= 2 and rows >= 2 * sub and pl.cdiv(rows, tile_rows) < 2:
        # Dual-TensorCore chips (v7x): >= 2 grid steps so the "parallel" axis
        # can shard rows across both cores.  Single-TC chips (v5e/v6e) keep
        # the fewest, largest steps (the grid is a serial loop there).
        tile_rows = max(sub, _round_up(pl.cdiv(rows, 2), sub))
    grid = (pl.cdiv(rows, tile_rows),)                 # ragged tail is masked
                                                       # by Pallas (no host pad)
    block_bytes = tile_rows * row_bytes
    # in + out double-buffered (4x block) plus in-kernel intermediates
    # (~8x block budget), capped per generation (v7x: 64 MiB physical VMEM).
    vmem_limit = int(min(max(32 << 20, 12 * block_bytes), vmem_cap_bytes))

    return pl.pallas_call(
        kernel,
        out_shape=jax.ShapeDtypeStruct((rows, width), arr.dtype),
        grid_spec=pltpu.PrefetchScalarGridSpec(
            num_scalar_prefetch=0,
            grid=grid,
            in_specs=[pl.BlockSpec((tile_rows, width), lambda i: (i, 0))],
            out_specs=pl.BlockSpec((tile_rows, width), lambda i: (i, 0)),
        ),
        compiler_params=pltpu.CompilerParams(
            dimension_semantics=("parallel",),
            vmem_limit_bytes=vmem_limit,
        ),
        cost_estimate=pl.CostEstimate(
            flops=2 * rows * width,
            transcendentals=0,
            bytes_accessed=2 * rows * width * itemsize,
        ),
    )(arr)


def straight_through_softmax(x, *, target_block_bytes=4 << 20):
    """Forward of StraightThroughSoftMax: one_hot(argmax(x, axis=-1))."""
    orig_shape = x.shape
    D = int(orig_shape[-1])
    R = 1
    for s in orig_shape[:-1]:
        R *= int(s)
    if R == 0 or D == 0:
        return jnp.zeros(orig_shape, x.dtype)
    x2 = x.reshape(R, D)

    gen, num_cores, vmem_cap = _tpu_props()
    use_narrow = gen >= 6                              # bf16 VPU/XLU: v6e / v7x

    # Lane-dense packing: for D < 128 with 128 % D == 0 (so D is a power of
    # two), view (R, D) as (R // g, g * D) with g * D == 128.  The reshape is
    # contiguous -> free.
    g = 128 // D if (D < 128 and 128 % D == 0) else 1
    is_float = jnp.issubdtype(x.dtype, jnp.floating)

    if g > 1 and R % g == 0 and is_float:
        xdt = jnp.dtype(x.dtype)
        if use_narrow and xdt in (jnp.dtype(jnp.float32), jnp.dtype(jnp.bfloat16)):
            value_dtype = xdt                          # keep bf16 rolls on v6e/v7x
        else:
            value_dtype = jnp.float32                  # v5e: no bf16 VALU
        index_dtype = jnp.bfloat16 if use_narrow else jnp.float32  # pos <= 127 exact
        packed = x2.reshape(R // g, g * D)
        kernel = functools.partial(_st_softmax_packed_kernel, d=D,
                                   value_dtype=value_dtype, index_dtype=index_dtype)
        out = _run_grid(kernel, packed,
                        target_block_bytes=target_block_bytes,
                        num_cores=num_cores, vmem_cap_bytes=vmem_cap).reshape(R, D)
    else:
        # TODO(synk): R % g != 0 or a non-power-of-two D < 128 falls back to
        # this lane-sparse generic kernel; covering it lane-dense would need a
        # padded copy of the whole array (an extra HBM pass), not a clear win.
        index_dtype = jnp.bfloat16 if (use_narrow and D <= 256) else jnp.int32
        kernel = functools.partial(_st_softmax_kernel, index_dtype=index_dtype)
        out = _run_grid(kernel, x2,
                        target_block_bytes=target_block_bytes,
                        num_cores=num_cores, vmem_cap_bytes=vmem_cap)
    return out.reshape(orig_shape)


# ----------------------------------------------------------------------------
# Self-test
# ----------------------------------------------------------------------------
if __name__ == "__main__":
    key = jax.random.PRNGKey(0)
    k1, k2, k3 = jax.random.split(key, 3)

    # (B, C, H, D) activation, softmax over the last axis; D = 16 exercises the
    # lane-dense packed path (and the roll-direction-agnostic segment masks).
    B, C, H, D = 2, 4, 16, 16
    x = jax.random.normal(k1, (B, C, H, D), dtype=jnp.float32)
    out = jax.block_until_ready(straight_through_softmax(x))
    ref = jax.nn.one_hot(jnp.argmax(x, axis=-1), D, dtype=x.dtype)
    assert out.shape == x.shape and out.dtype == x.dtype
    assert jnp.array_equal(out, ref), "mismatch vs one_hot(argmax) (packed f32)"
    assert bool(jnp.all(jnp.sum(out, axis=-1) == 1.0))

    # bf16 input, D = 32: exercises the bf16 value / bf16 index packed passes
    # on v6e/v7x (f32 fallback elsewhere).
    xb = jax.random.normal(k2, (B, C, H, 32), dtype=jnp.bfloat16)
    outb = jax.block_until_ready(straight_through_softmax(xb))
    refb = jax.nn.one_hot(jnp.argmax(xb, axis=-1), 32, dtype=xb.dtype)
    assert jnp.array_equal(outb, refb), "mismatch vs one_hot(argmax) (packed bf16)"

    # Generic (already lane-dense) path: D = 128.
    x2 = jax.random.normal(k3, (B, C, H, 128), dtype=jnp.float32)
    out2 = jax.block_until_ready(straight_through_softmax(x2))
    ref2 = jax.nn.one_hot(jnp.argmax(x2, axis=-1), 128, dtype=x2.dtype)
    assert jnp.array_equal(out2, ref2), "mismatch vs one_hot(argmax) (generic path)"

    print("KERNEL_OK")
</pallas_src>

<mosaic_0001>
module attributes {stable_mosaic.version = 11 : i64} {
  func.func @_st_softmax_packed_kernel(%arg0: i32, %arg1: memref<16x128xf32, #tpu.memory_space<vmem>>, %arg2: memref<16x128xf32, #tpu.memory_space<vmem>>) attributes {dimension_semantics = [#tpu.dimension_semantics<parallel>], iteration_bounds = array<i64: 1>, scalar_prefetch = 0 : i64, scratch_operands = 0 : i64, tpu.core_type = #tpu.core_type<tc>, window_params = [{transform_indices = @transform_0, window_bounds = array<i64: 16, 128>}, {transform_indices = @transform_1, window_bounds = array<i64: 16, 128>}]} {
    %c0 = arith.constant 0 : index
    %c0_0 = arith.constant 0 : index
    %0 = vector.load %arg1[%c0, %c0_0] : memref<16x128xf32, #tpu.memory_space<vmem>>, vector<16x128xf32>
    %1 = tpu.iota {dimensions = array<i32: 1>} : vector<8x128xi32>
    %c4_i32 = arith.constant 4 : i32
    %2 = vector.broadcast %c4_i32 : i32 to vector<8x128xi32>
    %3 = arith.shrsi %1, %2 : vector<8x128xi32>
    %c1_i32 = arith.constant 1 : i32
    %4 = tpu.dynamic_rotate %1 by %c1_i32 dim 1 : vector<8x128xi32>, i32 -> vector<8x128xi32>
    %5 = arith.subi %4, %1 : vector<8x128xi32>
    %c127_i32 = arith.constant 127 : i32
    %6 = vector.broadcast %c127_i32 : i32 to vector<8x128xi32>
    %7 = arith.andi %5, %6 : vector<8x128xi32>
    %c1_i32_1 = arith.constant 1 : i32
    %8 = vector.broadcast %c1_i32_1 : i32 to vector<8x128xi32>
    %9 = arith.muli %8, %7 : vector<8x128xi32>
    %10 = arith.addi %1, %9 : vector<8x128xi32>
    %c127_i32_2 = arith.constant 127 : i32
    %11 = vector.broadcast %c127_i32_2 : i32 to vector<8x128xi32>
    %12 = arith.andi %10, %11 : vector<8x128xi32>
    %c4_i32_3 = arith.constant 4 : i32
    %13 = vector.broadcast %c4_i32_3 : i32 to vector<8x128xi32>
    %14 = arith.shrsi %12, %13 : vector<8x128xi32>
    %15 = arith.cmpi eq, %14, %3 : vector<8x128xi32>
    %16 = vector.extract_strided_slice %15 {offsets = [0, 0], sizes = [1, 128], strides = [1, 1]} : vector<8x128xi1> to vector<1x128xi1>
    %c2_i32 = arith.constant 2 : i32
    %17 = vector.broadcast %c2_i32 : i32 to vector<8x128xi32>
    %18 = arith.muli %17, %7 : vector<8x128xi32>
    %19 = arith.addi %1, %18 : vector<8x128xi32>
    %c127_i32_4 = arith.constant 127 : i32
    %20 = vector.broadcast %c127_i32_4 : i32 to vector<8x128xi32>
    %21 = arith.andi %19, %20 : vector<8x128xi32>
    %c4_i32_5 = arith.constant 4 : i32
    %22 = vector.broadcast %c4_i32_5 : i32 to vector<8x128xi32>
    %23 = arith.shrsi %21, %22 : vector<8x128xi32>
    %24 = arith.cmpi eq, %23, %3 : vector<8x128xi32>
    %25 = vector.extract_strided_slice %24 {offsets = [0, 0], sizes = [1, 128], strides = [1, 1]} : vector<8x128xi1> to vector<1x128xi1>
    %c4_i32_6 = arith.constant 4 : i32
    %26 = vector.broadcast %c4_i32_6 : i32 to vector<8x128xi32>
    %27 = arith.muli %26, %7 : vector<8x128xi32>
    %28 = arith.addi %1, %27 : vector<8x128xi32>
    %c127_i32_7 = arith.constant 127 : i32
    %29 = vector.broadcast %c127_i32_7 : i32 to vector<8x128xi32>
    %30 = arith.andi %28, %29 : vector<8x128xi32>
    %c4_i32_8 = arith.constant 4 : i32
    %31 = vector.broadcast %c4_i32_8 : i32 to vector<8x128xi32>
    %32 = arith.shrsi %30, %31 : vector<8x128xi32>
    %33 = arith.cmpi eq, %32, %3 : vector<8x128xi32>
    %34 = vector.extract_strided_slice %33 {offsets = [0, 0], sizes = [1, 128], strides = [1, 1]} : vector<8x128xi1> to vector<1x128xi1>
    %c8_i32 = arith.constant 8 : i32
    %35 = vector.broadcast %c8_i32 : i32 to vector<8x128xi32>
    %36 = arith.muli %35, %7 : vector<8x128xi32>
    %37 = arith.addi %1, %36 : vector<8x128xi32>
    %c127_i32_9 = arith.constant 127 : i32
    %38 = vector.broadcast %c127_i32_9 : i32 to vector<8x128xi32>
    %39 = arith.andi %37, %38 : vector<8x128xi32>
    %c4_i32_10 = arith.constant 4 : i32
    %40 = vector.broadcast %c4_i32_10 : i32 to vector<8x128xi32>
    %41 = arith.shrsi %39, %40 : vector<8x128xi32>
    %42 = arith.cmpi eq, %41, %3 : vector<8x128xi32>
    %43 = vector.extract_strided_slice %42 {offsets = [0, 0], sizes = [1, 128], strides = [1, 1]} : vector<8x128xi1> to vector<1x128xi1>
    %c15_i32 = arith.constant 15 : i32
    %44 = vector.broadcast %c15_i32 : i32 to vector<8x128xi32>
    %45 = arith.andi %1, %44 : vector<8x128xi32>
    %46 = vector.extract_strided_slice %45 {offsets = [0, 0], sizes = [1, 128], strides = [1, 1]} : vector<8x128xi32> to vector<1x128xi32>
    %47 = arith.sitofp %46 : vector<1x128xi32> to vector<1x128xf32>
    %c1_i32_11 = arith.constant 1 : i32
    %48 = tpu.dynamic_rotate %0 by %c1_i32_11 dim 1 : vector<16x128xf32>, i32 -> vector<16x128xf32>
    %c113_i32 = arith.constant 113 : i32
    %49 = tpu.dynamic_rotate %0 by %c113_i32 dim 1 : vector<16x128xf32>, i32 -> vector<16x128xf32>
    %50 = vector.shape_cast %16 : vector<1x128xi1> to vector<1x128xi1>
    %51 = vector.broadcast %50 : vector<1x128xi1> to vector<16x128xi1>
    %52 = arith.select %51, %48, %49 : vector<16x128xi1>, vector<16x128xf32>
    %53 = arith.maximumf %0, %52 : vector<16x128xf32>
    %c2_i32_12 = arith.constant 2 : i32
    %54 = tpu.dynamic_rotate %53 by %c2_i32_12 dim 1 : vector<16x128xf32>, i32 -> vector<16x128xf32>
    %c114_i32 = arith.constant 114 : i32
    %55 = tpu.dynamic_rotate %53 by %c114_i32 dim 1 : vector<16x128xf32>, i32 -> vector<16x128xf32>
    %56 = vector.shape_cast %25 : vector<1x128xi1> to vector<1x128xi1>
    %57 = vector.broadcast %56 : vector<1x128xi1> to vector<16x128xi1>
    %58 = arith.select %57, %54, %55 : vector<16x128xi1>, vector<16x128xf32>
    %59 = arith.maximumf %53, %58 : vector<16x128xf32>
    %c4_i32_13 = arith.constant 4 : i32
    %60 = tpu.dynamic_rotate %59 by %c4_i32_13 dim 1 : vector<16x128xf32>, i32 -> vector<16x128xf32>
    %c116_i32 = arith.constant 116 : i32
    %61 = tpu.dynamic_rotate %59 by %c116_i32 dim 1 : vector<16x128xf32>, i32 -> vector<16x128xf32>
    %62 = vector.shape_cast %34 : vector<1x128xi1> to vector<1x128xi1>
    %63 = vector.broadcast %62 : vector<1x128xi1> to vector<16x128xi1>
    %64 = arith.select %63, %60, %61 : vector<16x128xi1>, vector<16x128xf32>
    %65 = arith.maximumf %59, %64 : vector<16x128xf32>
    %c8_i32_14 = arith.constant 8 : i32
    %66 = tpu.dynamic_rotate %65 by %c8_i32_14 dim 1 : vector<16x128xf32>, i32 -> vector<16x128xf32>
    %c120_i32 = arith.constant 120 : i32
    %67 = tpu.dynamic_rotate %65 by %c120_i32 dim 1 : vector<16x128xf32>, i32 -> vector<16x128xf32>
    %68 = vector.shape_cast %43 : vector<1x128xi1> to vector<1x128xi1>
    %69 = vector.broadcast %68 : vector<1x128xi1> to vector<16x128xi1>
    %70 = arith.select %69, %66, %67 : vector<16x128xi1>, vector<16x128xf32>
    %71 = arith.maximumf %65, %70 : vector<16x128xf32>
    %72 = arith.cmpf oeq, %0, %71 : vector<16x128xf32>
    %cst = arith.constant 1.600000e+01 : f32
    %73 = vector.shape_cast %47 : vector<1x128xf32> to vector<1x128xf32>
    %74 = vector.broadcast %73 : vector<1x128xf32> to vector<16x128xf32>
    %75 = vector.broadcast %cst : f32 to vector<16x128xf32>
    %76 = arith.select %72, %74, %75 : vector<16x128xi1>, vector<16x128xf32>
    %c1_i32_15 = arith.constant 1 : i32
    %77 = tpu.dynamic_rotate %76 by %c1_i32_15 dim 1 : vector<16x128xf32>, i32 -> vector<16x128xf32>
    %c113_i32_16 = arith.constant 113 : i32
    %78 = tpu.dynamic_rotate %76 by %c113_i32_16 dim 1 : vector<16x128xf32>, i32 -> vector<16x128xf32>
    %79 = vector.shape_cast %16 : vector<1x128xi1> to vector<1x128xi1>
    %80 = vector.broadcast %79 : vector<1x128xi1> to vector<16x128xi1>
    %81 = arith.select %80, %77, %78 : vector<16x128xi1>, vector<16x128xf32>
    %82 = arith.minimumf %76, %81 : vector<16x128xf32>
    %c2_i32_17 = arith.constant 2 : i32
    %83 = tpu.dynamic_rotate %82 by %c2_i32_17 dim 1 : vector<16x128xf32>, i32 -> vector<16x128xf32>
    %c114_i32_18 = arith.constant 114 : i32
    %84 = tpu.dynamic_rotate %82 by %c114_i32_18 dim 1 : vector<16x128xf32>, i32 -> vector<16x128xf32>
    %85 = vector.shape_cast %25 : vector<1x128xi1> to vector<1x128xi1>
    %86 = vector.broadcast %85 : vector<1x128xi1> to vector<16x128xi1>
    %87 = arith.select %86, %83, %84 : vector<16x128xi1>, vector<16x128xf32>
    %88 = arith.minimumf %82, %87 : vector<16x128xf32>
    %c4_i32_19 = arith.constant 4 : i32
    %89 = tpu.dynamic_rotate %88 by %c4_i32_19 dim 1 : vector<16x128xf32>, i32 -> vector<16x128xf32>
    %c116_i32_20 = arith.constant 116 : i32
    %90 = tpu.dynamic_rotate %88 by %c116_i32_20 dim 1 : vector<16x128xf32>, i32 -> vector<16x128xf32>
    %91 = vector.shape_cast %34 : vector<1x128xi1> to vector<1x128xi1>
    %92 = vector.broadcast %91 : vector<1x128xi1> to vector<16x128xi1>
    %93 = arith.select %92, %89, %90 : vector<16x128xi1>, vector<16x128xf32>
    %94 = arith.minimumf %88, %93 : vector<16x128xf32>
    %c8_i32_21 = arith.constant 8 : i32
    %95 = tpu.dynamic_rotate %94 by %c8_i32_21 dim 1 : vector<16x128xf32>, i32 -> vector<16x128xf32>
    %c120_i32_22 = arith.constant 120 : i32
    %96 = tpu.dynamic_rotate %94 by %c120_i32_22 dim 1 : vector<16x128xf32>, i32 -> vector<16x128xf32>
    %97 = vector.shape_cast %43 : vector<1x128xi1> to vector<1x128xi1>
    %98 = vector.broadcast %97 : vector<1x128xi1> to vector<16x128xi1>
    %99 = arith.select %98, %95, %96 : vector<16x128xi1>, vector<16x128xf32>
    %100 = arith.minimumf %94, %99 : vector<16x128xf32>
    %101 = vector.broadcast %47 : vector<1x128xf32> to vector<16x128xf32>
    %102 = arith.cmpf oeq, %101, %100 : vector<16x128xf32>
    %103 = arith.extui %102 : vector<16x128xi1> to vector<16x128xi32>
    %104 = arith.sitofp %103 : vector<16x128xi32> to vector<16x128xf32>
    %c0_23 = arith.constant 0 : index
    %c0_24 = arith.constant 0 : index
    %105 = vector.load %arg2[%c0_23, %c0_24] : memref<16x128xf32, #tpu.memory_space<vmem>>, vector<16x128xf32>
    tpu.vector_store %arg2[%c0_23, %c0_24], %104 {strides = array<i32>} : memref<16x128xf32, #tpu.memory_space<vmem>>, vector<16x128xf32>,
    return
  }
  func.func @transform_0(%arg0: i32) -> (i32, i32) {
    %c0_i32 = arith.constant 0 : i32
    %c0_i32_0 = arith.constant 0 : i32
    return %arg0, %c0_i32 : i32, i32
  }
  func.func @transform_1(%arg0: i32) -> (i32, i32) {
    %c0_i32 = arith.constant 0 : i32
    %c0_i32_0 = arith.constant 0 : i32
    return %arg0, %c0_i32 : i32, i32
  }
}

</mosaic_0001>

<llo_original>
// kernel: tpu_custom_call.1
$region0: #{tpu_custom_call.1}
  #allocation0 [shape = 'u32[]', space=smem, size = 0x4, offset = 0x4, fixed_abs, tag = 'smem constant byte address 0x4 - core index']
  #allocation1 [shape = 'u32[144,128]{1,0:T(1,128)}', space=vmem, size = 0x12000, scoped, tag = 'internal scratch']
  %s0 = inlined_call_operand.hbm [shape: f32[16,128], index: 0, kind: input, shape index: {}]
  %s1 = inlined_call_operand.hbm [shape: f32[16,128], index: 1, kind: output, shape index: {}]
  %s2 = sld [smem:[#allocation0]]
  $region18: #{tpu_custom_call.1} parent=0
    _
  %s4 = ssub.s32 1, %s2
  %s5 = scalar_select 0, %s4, %s2
  $region1: #{tpu_custom_call.1} parent=0
    #allocation2 [shape = 'u8[8192]{0}', space=vmem, size = 0x2000, scoped, tag = 'input window, operand 0, single buffered']
    #allocation3 [shape = 's32[1]{0}', space=sflag, size = 0x4, scoped, tag = 'scoped memory for tpu_custom_call.1']
    #allocation4 [shape = 's32[1]{0}', space=sflag, size = 0x4, scoped, tag = 'scoped memory for tpu_custom_call.1']
    #allocation5 [shape = 'u8[8192]{0}', space=vmem, size = 0x2000, scoped, tag = 'output window, operand 0, single buffered']
    %6 = vsyncpa [#allocation3], 0
    %7 = vsyncpa [#allocation4], 0
    // Predicated region
    $region2: #{tpu_custom_call.1} parent=1 // pred_check
      _
    $region3: #{tpu_custom_call.1} parent=1 // pred_check_branch
      %9 = sbr.rel (0) target = $region5
    $region4: #{tpu_custom_call.1} parent=1 // pred_region
      %s11 = ssub.s32 256, 256
      %12 = vsyncadd [#allocation3], %s11
      %s13 = sshll.u32 [#allocation2], 4
      %s14 = int_to_ptr.vmem [resolvable:$true] %s13
      %19 = dma.hbm_to_vmem [thread:$0]  %s0, 256, %s14, [#allocation3], 128, 128, 8
    $region5: #{tpu_custom_call.1} parent=1 // pred_fallthru
      _
    // Predicated region
    $region6: #{tpu_custom_call.1} parent=1 // pred_check
      _
    $region7: #{tpu_custom_call.1} parent=1 // pred_check_branch
      %21 = sbr.rel (0) target = $region9
    $region8: #{tpu_custom_call.1} parent=1 // pred_region
      %22 = dma.done [#allocation3], 256
    $region9: #{tpu_custom_call.1} parent=1 // pred_fallthru
      _
    %v23 = vld [vmem:[#allocation2] sm:$0xff]
    %v24 = vld [vmem:[#allocation2 + $0x8] sm:$0xff]
    %v25 = vlaneseq
    %v26 = vand.u32 %v25, 127
    %v27 = vshra.s32 %v26, 4
    %28 = vrot.lane.b32.xlu0 %v26, 1
    %v29 = vpop.permute.xlu0 %28
    %v30 = vsub.s32 %v29, %v26
    %v31 = vand.u32 %v30, 127
    %v32 = vadd.s32 %v26, %v31
    %v33 = vand.u32 %v32, 127
    %v34 = vshra.s32 %v33, 4
    %vm35 = vcmp.eq.s32.totalorder %v34, %v27
    %v36 = vmul.u32 %v31, 2
    %v37 = vadd.s32 %v26, %v36
    %v38 = vand.u32 %v37, 127
    %v39 = vshra.s32 %v38, 4
    %vm40 = vcmp.eq.s32.totalorder %v39, %v27
    %v41 = vmul.u32 %v31, 4
    %v42 = vadd.s32 %v26, %v41
    %v43 = vand.u32 %v42, 127
    %v44 = vshra.s32 %v43, 4
    %vm45 = vcmp.eq.s32.totalorder %v44, %v27
    %v46 = vmul.u32 %v31, 8
    %v47 = vadd.s32 %v26, %v46
    %v48 = vand.u32 %v47, 127
    %v49 = vshra.s32 %v48, 4
    %vm50 = vcmp.eq.s32.totalorder %v49, %v27
    %v51 = vand.u32 %v26, 15
    %v52 = vcvt.s32.f32 %v51
    %53 = vrot.lane.b32.xlu0 %v23, 1
    %v54 = vpop.permute.xlu0 %53
    %55 = vrot.lane.b32.xlu0 %v24, 1
    %v56 = vpop.permute.xlu0 %55
    %57 = vrot.lane.b32.xlu0 %v23, 113
    %v58 = vpop.permute.xlu0 %57
    %59 = vrot.lane.b32.xlu0 %v24, 113
    %v60 = vpop.permute.xlu0 %59
    %v61 = vsel %vm35, 1, 0
    %vm62 = vcmp.eq.s32.totalorder %v61, 1
    %v65 = vrot.slane %v54, 1
    %v66 = vrot.slane %v54, 2
    %v67 = vrot.slane %v54, 3
    %v68 = vrot.slane %v54, 4
    %v69 = vrot.slane %v54, 5
    %v70 = vrot.slane %v54, 6
    %v71 = vrot.slane %v54, 7
    %v72 = vrot.slane %v56, 1
    %v73 = vrot.slane %v56, 2
    %v74 = vrot.slane %v56, 3
    %v75 = vrot.slane %v56, 4
    %v76 = vrot.slane %v56, 5
    %v77 = vrot.slane %v56, 6
    %v78 = vrot.slane %v56, 7
    %v97 = vrot.slane %v58, 1
    %v98 = vrot.slane %v58, 2
    %v99 = vrot.slane %v58, 3
    %v100 = vrot.slane %v58, 4
    %v101 = vrot.slane %v58, 5
    %v102 = vrot.slane %v58, 6
    %v103 = vrot.slane %v58, 7
    %v104 = vrot.slane %v60, 1
    %v105 = vrot.slane %v60, 2
    %v106 = vrot.slane %v60, 3
    %v107 = vrot.slane %v60, 4
    %v108 = vrot.slane %v60, 5
    %v109 = vrot.slane %v60, 6
    %v110 = vrot.slane %v60, 7
    %v127 = vsel %vm62, %v54, %v58
    %v128 = vsel %vm62, %v65, %v97
    %v129 = vsel %vm62, %v66, %v98
    %v130 = vsel %vm62, %v67, %v99
    %v131 = vsel %vm62, %v68, %v100
    %v132 = vsel %vm62, %v69, %v101
    %v133 = vsel %vm62, %v70, %v102
    %v134 = vsel %vm62, %v71, %v103
    %v135 = vsel %vm62, %v56, %v60
    %v136 = vsel %vm62, %v72, %v104
    %v137 = vsel %vm62, %v73, %v105
    %v138 = vsel %vm62, %v74, %v106
    %v139 = vsel %vm62, %v75, %v107
    %v140 = vsel %vm62, %v76, %v108
    %v141 = vsel %vm62, %v77, %v109
    %v142 = vsel %vm62, %v78, %v110
    %v159 = vrot.slane %v128, 7
    %vm160 = vcmask 1041409
    %v161 = vsel %vm160, %v159, %v127
    %v162 = vrot.slane %v129, 6
    %vm163 = vcmask 1042434
    %v164 = vsel %vm163, %v162, %v161
    %v165 = vrot.slane %v130, 5
    %vm166 = vcmask 1043459
    %v167 = vsel %vm166, %v165, %v164
    %v168 = vrot.slane %v131, 4
    %vm169 = vcmask 1044484
    %v170 = vsel %vm169, %v168, %v167
    %v171 = vrot.slane %v132, 3
    %vm172 = vcmask 1045509
    %v173 = vsel %vm172, %v171, %v170
    %v174 = vrot.slane %v133, 2
    %vm175 = vcmask 1046534
    %v176 = vsel %vm175, %v174, %v173
    %v177 = vrot.slane %v134, 1
    %vm178 = vcmask 1047559
    %v179 = vsel %vm178, %v177, %v176
    %v180 = vrot.slane %v136, 7
    %v181 = vsel %vm160, %v180, %v135
    %v182 = vrot.slane %v137, 6
    %v183 = vsel %vm163, %v182, %v181
    %v184 = vrot.slane %v138, 5
    %v185 = vsel %vm166, %v184, %v183
    %v186 = vrot.slane %v139, 4
    %v187 = vsel %vm169, %v186, %v185
    %v188 = vrot.slane %v140, 3
    %v189 = vsel %vm172, %v188, %v187
    %v190 = vrot.slane %v141, 2
    %v191 = vsel %vm175, %v190, %v189
    %v192 = vrot.slane %v142, 1
    %v193 = vsel %vm178, %v192, %v191
    %v196 = vmax.f32 %v23, %v179
    %v197 = vmax.f32 %v24, %v193
    %198 = vrot.lane.b32.xlu0 %v196, 2
    %v199 = vpop.permute.xlu0 %198
    %200 = vrot.lane.b32.xlu0 %v197, 2
    %v201 = vpop.permute.xlu0 %200
    %202 = vrot.lane.b32.xlu0 %v196, 114
    %v203 = vpop.permute.xlu0 %202
    %204 = vrot.lane.b32.xlu0 %v197, 114
    %v205 = vpop.permute.xlu0 %204
    %v206 = vsel %vm40, 1, 0
    %vm207 = vcmp.eq.s32.totalorder %v206, 1
    %v210 = vrot.slane %v199, 1
    %v211 = vrot.slane %v199, 2
    %v212 = vrot.slane %v199, 3
    %v213 = vrot.slane %v199, 4
    %v214 = vrot.slane %v199, 5
    %v215 = vrot.slane %v199, 6
    %v216 = vrot.slane %v199, 7
    %v217 = vrot.slane %v201, 1
    %v218 = vrot.slane %v201, 2
    %v219 = vrot.slane %v201, 3
    %v220 = vrot.slane %v201, 4
    %v221 = vrot.slane %v201, 5
    %v222 = vrot.slane %v201, 6
    %v223 = vrot.slane %v201, 7
    %v242 = vrot.slane %v203, 1
    %v243 = vrot.slane %v203, 2
    %v244 = vrot.slane %v203, 3
    %v245 = vrot.slane %v203, 4
    %v246 = vrot.slane %v203, 5
    %v247 = vrot.slane %v203, 6
    %v248 = vrot.slane %v203, 7
    %v249 = vrot.slane %v205, 1
    %v250 = vrot.slane %v205, 2
    %v251 = vrot.slane %v205, 3
    %v252 = vrot.slane %v205, 4
    %v253 = vrot.slane %v205, 5
    %v254 = vrot.slane %v205, 6
    %v255 = vrot.slane %v205, 7
    %v272 = vsel %vm207, %v199, %v203
    %v273 = vsel %vm207, %v210, %v242
    %v274 = vsel %vm207, %v211, %v243
    %v275 = vsel %vm207, %v212, %v244
    %v276 = vsel %vm207, %v213, %v245
    %v277 = vsel %vm207, %v214, %v246
    %v278 = vsel %vm207, %v215, %v247
    %v279 = vsel %vm207, %v216, %v248
    %v280 = vsel %vm207, %v201, %v205
    %v281 = vsel %vm207, %v217, %v249
    %v282 = vsel %vm207, %v218, %v250
    %v283 = vsel %vm207, %v219, %v251
    %v284 = vsel %vm207, %v220, %v252
    %v285 = vsel %vm207, %v221, %v253
    %v286 = vsel %vm207, %v222, %v254
    %v287 = vsel %vm207, %v223, %v255
    %v304 = vrot.slane %v273, 7
    %v305 = vsel %vm160, %v304, %v272
    %v306 = vrot.slane %v274, 6
    %v307 = vsel %vm163, %v306, %v305
    %v308 = vrot.slane %v275, 5
    %v309 = vsel %vm166, %v308, %v307
    %v310 = vrot.slane %v276, 4
    %v311 = vsel %vm169, %v310, %v309
    %v312 = vrot.slane %v277, 3
    %v313 = vsel %vm172, %v312, %v311
    %v314 = vrot.slane %v278, 2
    %v315 = vsel %vm175, %v314, %v313
    %v316 = vrot.slane %v279, 1
    %v317 = vsel %vm178, %v316, %v315
    %v318 = vrot.slane %v281, 7
    %v319 = vsel %vm160, %v318, %v280
    %v320 = vrot.slane %v282, 6
    %v321 = vsel %vm163, %v320, %v319
    %v322 = vrot.slane %v283, 5
    %v323 = vsel %vm166, %v322, %v321
    %v324 = vrot.slane %v284, 4
    %v325 = vsel %vm169, %v324, %v323
    %v326 = vrot.slane %v285, 3
    %v327 = vsel %vm172, %v326, %v325
    %v328 = vrot.slane %v286, 2
    %v329 = vsel %vm175, %v328, %v327
    %v330 = vrot.slane %v287, 1
    %v331 = vsel %vm178, %v330, %v329
    %v334 = vmax.f32 %v196, %v317
    %v335 = vmax.f32 %v197, %v331
    %336 = vrot.lane.b32.xlu0 %v334, 4
    %v337 = vpop.permute.xlu0 %336
    %338 = vrot.lane.b32.xlu0 %v335, 4
    %v339 = vpop.permute.xlu0 %338
    %340 = vrot.lane.b32.xlu0 %v334, 116
    %v341 = vpop.permute.xlu0 %340
    %342 = vrot.lane.b32.xlu0 %v335, 116
    %v343 = vpop.permute.xlu0 %342
    %v344 = vsel %vm45, 1, 0
    %vm345 = vcmp.eq.s32.totalorder %v344, 1
    %v348 = vrot.slane %v337, 1
    %v349 = vrot.slane %v337, 2
    %v350 = vrot.slane %v337, 3
    %v351 = vrot.slane %v337, 4
    %v352 = vrot.slane %v337, 5
    %v353 = vrot.slane %v337, 6
    %v354 = vrot.slane %v337, 7
    %v355 = vrot.slane %v339, 1
    %v356 = vrot.slane %v339, 2
    %v357 = vrot.slane %v339, 3
    %v358 = vrot.slane %v339, 4
    %v359 = vrot.slane %v339, 5
    %v360 = vrot.slane %v339, 6
    %v361 = vrot.slane %v339, 7
    %v380 = vrot.slane %v341, 1
    %v381 = vrot.slane %v341, 2
    %v382 = vrot.slane %v341, 3
    %v383 = vrot.slane %v341, 4
    %v384 = vrot.slane %v341, 5
    %v385 = vrot.slane %v341, 6
    %v386 = vrot.slane %v341, 7
    %v387 = vrot.slane %v343, 1
    %v388 = vrot.slane %v343, 2
    %v389 = vrot.slane %v343, 3
    %v390 = vrot.slane %v343, 4
    %v391 = vrot.slane %v343, 5
    %v392 = vrot.slane %v343, 6
    %v393 = vrot.slane %v343, 7
    %v410 = vsel %vm345, %v337, %v341
    %v411 = vsel %vm345, %v348, %v380
    %v412 = vsel %vm345, %v349, %v381
    %v413 = vsel %vm345, %v350, %v382
    %v414 = vsel %vm345, %v351, %v383
    %v415 = vsel %vm345, %v352, %v384
    %v416 = vsel %vm345, %v353, %v385
    %v417 = vsel %vm345, %v354, %v386
    %v418 = vsel %vm345, %v339, %v343
    %v419 = vsel %vm345, %v355, %v387
    %v420 = vsel %vm345, %v356, %v388
    %v421 = vsel %vm345, %v357, %v389
    %v422 = vsel %vm345, %v358, %v390
    %v423 = vsel %vm345, %v359, %v391
    %v424 = vsel %vm345, %v360, %v392
    %v425 = vsel %vm345, %v361, %v393
    %v442 = vrot.slane %v411, 7
    %v443 = vsel %vm160, %v442, %v410
    %v444 = vrot.slane %v412, 6
    %v445 = vsel %vm163, %v444, %v443
    %v446 = vrot.slane %v413, 5
    %v447 = vsel %vm166, %v446, %v445
    %v448 = vrot.slane %v414, 4
    %v449 = vsel %vm169, %v448, %v447
    %v450 = vrot.slane %v415, 3
    %v451 = vsel %vm172, %v450, %v449
    %v452 = vrot.slane %v416, 2
    %v453 = vsel %vm175, %v452, %v451
    %v454 = vrot.slane %v417, 1
    %v455 = vsel %vm178, %v454, %v453
    %v456 = vrot.slane %v419, 7
    %v457 = vsel %vm160, %v456, %v418
    %v458 = vrot.slane %v420, 6
    %v459 = vsel %vm163, %v458, %v457
    %v460 = vrot.slane %v421, 5
    %v461 = vsel %vm166, %v460, %v459
    %v462 = vrot.slane %v422, 4
    %v463 = vsel %vm169, %v462, %v461
    %v464 = vrot.slane %v423, 3
    %v465 = vsel %vm172, %v464, %v463
    %v466 = vrot.slane %v424, 2
    %v467 = vsel %vm175, %v466, %v465
    %v468 = vrot.slane %v425, 1
    %v469 = vsel %vm178, %v468, %v467
    %v472 = vmax.f32 %v334, %v455
    %v473 = vmax.f32 %v335, %v469
    %474 = vrot.lane.b32.xlu0 %v472, 8
    %v475 = vpop.permute.xlu0 %474
    %476 = vrot.lane.b32.xlu0 %v473, 8
    %v477 = vpop.permute.xlu0 %476
    %478 = vrot.lane.b32.xlu0 %v472, 120
    %v479 = vpop.permute.xlu0 %478
    %480 = vrot.lane.b32.xlu0 %v473, 120
    %v481 = vpop.permute.xlu0 %480
    %v482 = vsel %vm50, 1, 0
    %vm483 = vcmp.eq.s32.totalorder %v482, 1
    %v486 = vrot.slane %v475, 1
    %v487 = vrot.slane %v475, 2
    %v488 = vrot.slane %v475, 3
    %v489 = vrot.slane %v475, 4
    %v490 = vrot.slane %v475, 5
    %v491 = vrot.slane %v475, 6
    %v492 = vrot.slane %v475, 7
    %v493 = vrot.slane %v477, 1
    %v494 = vrot.slane %v477, 2
    %v495 = vrot.slane %v477, 3
    %v496 = vrot.slane %v477, 4
    %v497 = vrot.slane %v477, 5
    %v498 = vrot.slane %v477, 6
    %v499 = vrot.slane %v477, 7
    %v518 = vrot.slane %v479, 1
    %v519 = vrot.slane %v479, 2
    %v520 = vrot.slane %v479, 3
    %v521 = vrot.slane %v479, 4
    %v522 = vrot.slane %v479, 5
    %v523 = vrot.slane %v479, 6
    %v524 = vrot.slane %v479, 7
    %v525 = vrot.slane %v481, 1
    %v526 = vrot.slane %v481, 2
    %v527 = vrot.slane %v481, 3
    %v528 = vrot.slane %v481, 4
    %v529 = vrot.slane %v481, 5
    %v530 = vrot.slane %v481, 6
    %v531 = vrot.slane %v481, 7
    %v548 = vsel %vm483, %v475, %v479
    %v549 = vsel %vm483, %v486, %v518
    %v550 = vsel %vm483, %v487, %v519
    %v551 = vsel %vm483, %v488, %v520
    %v552 = vsel %vm483, %v489, %v521
    %v553 = vsel %vm483, %v490, %v522
    %v554 = vsel %vm483, %v491, %v523
    %v555 = vsel %vm483, %v492, %v524
    %v556 = vsel %vm483, %v477, %v481
    %v557 = vsel %vm483, %v493, %v525
    %v558 = vsel %vm483, %v494, %v526
    %v559 = vsel %vm483, %v495, %v527
    %v560 = vsel %vm483, %v496, %v528
    %v561 = vsel %vm483, %v497, %v529
    %v562 = vsel %vm483, %v498, %v530
    %v563 = vsel %vm483, %v499, %v531
    %v580 = vrot.slane %v549, 7
    %v581 = vsel %vm160, %v580, %v548
    %v582 = vrot.slane %v550, 6
    %v583 = vsel %vm163, %v582, %v581
    %v584 = vrot.slane %v551, 5
    %v585 = vsel %vm166, %v584, %v583
    %v586 = vrot.slane %v552, 4
    %v587 = vsel %vm169, %v586, %v585
    %v588 = vrot.slane %v553, 3
    %v589 = vsel %vm172, %v588, %v587
    %v590 = vrot.slane %v554, 2
    %v591 = vsel %vm175, %v590, %v589
    %v592 = vrot.slane %v555, 1
    %v593 = vsel %vm178, %v592, %v591
    %v594 = vrot.slane %v557, 7
    %v595 = vsel %vm160, %v594, %v556
    %v596 = vrot.slane %v558, 6
    %v597 = vsel %vm163, %v596, %v595
    %v598 = vrot.slane %v559, 5
    %v599 = vsel %vm166, %v598, %v597
    %v600 = vrot.slane %v560, 4
    %v601 = vsel %vm169, %v600, %v599
    %v602 = vrot.slane %v561, 3
    %v603 = vsel %vm172, %v602, %v601
    %v604 = vrot.slane %v562, 2
    %v605 = vsel %vm175, %v604, %v603
    %v606 = vrot.slane %v563, 1
    %v607 = vsel %vm178, %v606, %v605
    %v610 = vmax.f32 %v472, %v593
    %v611 = vmax.f32 %v473, %v607
    %vm612 = vcmp.eq.f32.partialorder %v23, %v610
    %vm613 = vcmp.eq.f32.partialorder %v24, %v611
    %v614 = vsel %vm612, %v52, 16.0
    %v615 = vsel %vm613, %v52, 16.0
    %616 = vrot.lane.b32.xlu0 %v614, 1
    %v617 = vpop.permute.xlu0 %616
    %618 = vrot.lane.b32.xlu0 %v615, 1
    %v619 = vpop.permute.xlu0 %618
    %620 = vrot.lane.b32.xlu0 %v614, 113
    %v621 = vpop.permute.xlu0 %620
    %622 = vrot.lane.b32.xlu0 %v615, 113
    %v623 = vpop.permute.xlu0 %622
    %v626 = vrot.slane %v617, 1
    %v627 = vrot.slane %v617, 2
    %v628 = vrot.slane %v617, 3
    %v629 = vrot.slane %v617, 4
    %v630 = vrot.slane %v617, 5
    %v631 = vrot.slane %v617, 6
    %v632 = vrot.slane %v617, 7
    %v633 = vrot.slane %v619, 1
    %v634 = vrot.slane %v619, 2
    %v635 = vrot.slane %v619, 3
    %v636 = vrot.slane %v619, 4
    %v637 = vrot.slane %v619, 5
    %v638 = vrot.slane %v619, 6
    %v639 = vrot.slane %v619, 7
    %v658 = vrot.slane %v621, 1
    %v659 = vrot.slane %v621, 2
    %v660 = vrot.slane %v621, 3
    %v661 = vrot.slane %v621, 4
    %v662 = vrot.slane %v621, 5
    %v663 = vrot.slane %v621, 6
    %v664 = vrot.slane %v621, 7
    %v665 = vrot.slane %v623, 1
    %v666 = vrot.slane %v623, 2
    %v667 = vrot.slane %v623, 3
    %v668 = vrot.slane %v623, 4
    %v669 = vrot.slane %v623, 5
    %v670 = vrot.slane %v623, 6
    %v671 = vrot.slane %v623, 7
    %v688 = vsel %vm62, %v617, %v621
    %v689 = vsel %vm62, %v626, %v658
    %v690 = vsel %vm62, %v627, %v659
    %v691 = vsel %vm62, %v628, %v660
    %v692 = vsel %vm62, %v629, %v661
    %v693 = vsel %vm62, %v630, %v662
    %v694 = vsel %vm62, %v631, %v663
    %v695 = vsel %vm62, %v632, %v664
    %v696 = vsel %vm62, %v619, %v623
    %v697 = vsel %vm62, %v633, %v665
    %v698 = vsel %vm62, %v634, %v666
    %v699 = vsel %vm62, %v635, %v667
    %v700 = vsel %vm62, %v636, %v668
    %v701 = vsel %vm62, %v637, %v669
    %v702 = vsel %vm62, %v638, %v670
    %v703 = vsel %vm62, %v639, %v671
    %v720 = vrot.slane %v689, 7
    %v721 = vsel %vm160, %v720, %v688
    %v722 = vrot.slane %v690, 6
    %v723 = vsel %vm163, %v722, %v721
    %v724 = vrot.slane %v691, 5
    %v725 = vsel %vm166, %v724, %v723
    %v726 = vrot.slane %v692, 4
    %v727 = vsel %vm169, %v726, %v725
    %v728 = vrot.slane %v693, 3
    %v729 = vsel %vm172, %v728, %v727
    %v730 = vrot.slane %v694, 2
    %v731 = vsel %vm175, %v730, %v729
    %v732 = vrot.slane %v695, 1
    %v733 = vsel %vm178, %v732, %v731
    %v734 = vrot.slane %v697, 7
    %v735 = vsel %vm160, %v734, %v696
    %v736 = vrot.slane %v698, 6
    %v737 = vsel %vm163, %v736, %v735
    %v738 = vrot.slane %v699, 5
    %v739 = vsel %vm166, %v738, %v737
    %v740 = vrot.slane %v700, 4
    %v741 = vsel %vm169, %v740, %v739
    %v742 = vrot.slane %v701, 3
    %v743 = vsel %vm172, %v742, %v741
    %v744 = vrot.slane %v702, 2
    %v745 = vsel %vm175, %v744, %v743
    %v746 = vrot.slane %v703, 1
    %v747 = vsel %vm178, %v746, %v745
    %v750 = vmin.f32 %v614, %v733
    %v751 = vmin.f32 %v615, %v747
    %752 = vrot.lane.b32.xlu0 %v750, 2
    %v753 = vpop.permute.xlu0 %752
    %754 = vrot.lane.b32.xlu0 %v751, 2
    %v755 = vpop.permute.xlu0 %754
    %756 = vrot.lane.b32.xlu0 %v750, 114
    %v757 = vpop.permute.xlu0 %756
    %758 = vrot.lane.b32.xlu0 %v751, 114
    %v759 = vpop.permute.xlu0 %758
    %v762 = vrot.slane %v753, 1
    %v763 = vrot.slane %v753, 2
    %v764 = vrot.slane %v753, 3
    %v765 = vrot.slane %v753, 4
    %v766 = vrot.slane %v753, 5
    %v767 = vrot.slane %v753, 6
    %v768 = vrot.slane %v753, 7
    %v769 = vrot.slane %v755, 1
    %v770 = vrot.slane %v755, 2
    %v771 = vrot.slane %v755, 3
    %v772 = vrot.slane %v755, 4
    %v773 = vrot.slane %v755, 5
    %v774 = vrot.slane %v755, 6
    %v775 = vrot.slane %v755, 7
    %v794 = vrot.slane %v757, 1
    %v795 = vrot.slane %v757, 2
    %v796 = vrot.slane %v757, 3
    %v797 = vrot.slane %v757, 4
    %v798 = vrot.slane %v757, 5
    %v799 = vrot.slane %v757, 6
    %v800 = vrot.slane %v757, 7
    %v801 = vrot.slane %v759, 1
    %v802 = vrot.slane %v759, 2
    %v803 = vrot.slane %v759, 3
    %v804 = vrot.slane %v759, 4
    %v805 = vrot.slane %v759, 5
    %v806 = vrot.slane %v759, 6
    %v807 = vrot.slane %v759, 7
    %v824 = vsel %vm207, %v753, %v757
    %v825 = vsel %vm207, %v762, %v794
    %v826 = vsel %vm207, %v763, %v795
    %v827 = vsel %vm207, %v764, %v796
    %v828 = vsel %vm207, %v765, %v797
    %v829 = vsel %vm207, %v766, %v798
    %v830 = vsel %vm207, %v767, %v799
    %v831 = vsel %vm207, %v768, %v800
    %v832 = vsel %vm207, %v755, %v759
    %v833 = vsel %vm207, %v769, %v801
    %v834 = vsel %vm207, %v770, %v802
    %v835 = vsel %vm207, %v771, %v803
    %v836 = vsel %vm207, %v772, %v804
    %v837 = vsel %vm207, %v773, %v805
    %v838 = vsel %vm207, %v774, %v806
    %v839 = vsel %vm207, %v775, %v807
    %v856 = vrot.slane %v825, 7
    %v857 = vsel %vm160, %v856, %v824
    %v858 = vrot.slane %v826, 6
    %v859 = vsel %vm163, %v858, %v857
    %v860 = vrot.slane %v827, 5
    %v861 = vsel %vm166, %v860, %v859
    %v862 = vrot.slane %v828, 4
    %v863 = vsel %vm169, %v862, %v861
    %v864 = vrot.slane %v829, 3
    %v865 = vsel %vm172, %v864, %v863
    %v866 = vrot.slane %v830, 2
    %v867 = vsel %vm175, %v866, %v865
    %v868 = vrot.slane %v831, 1
    %v869 = vsel %vm178, %v868, %v867
    %v870 = vrot.slane %v833, 7
    %v871 = vsel %vm160, %v870, %v832
    %v872 = vrot.slane %v834, 6
    %v873 = vsel %vm163, %v872, %v871
    %v874 = vrot.slane %v835, 5
    %v875 = vsel %vm166, %v874, %v873
    %v876 = vrot.slane %v836, 4
    %v877 = vsel %vm169, %v876, %v875
    %v878 = vrot.slane %v837, 3
    %v879 = vsel %vm172, %v878, %v877
    %v880 = vrot.slane %v838, 2
    %v881 = vsel %vm175, %v880, %v879
    %v882 = vrot.slane %v839, 1
    %v883 = vsel %vm178, %v882, %v881
    %v886 = vmin.f32 %v750, %v869
    %v887 = vmin.f32 %v751, %v883
    %888 = vrot.lane.b32.xlu0 %v886, 4
    %v889 = vpop.permute.xlu0 %888
    %890 = vrot.lane.b32.xlu0 %v887, 4
    %v891 = vpop.permute.xlu0 %890
    %892 = vrot.lane.b32.xlu0 %v886, 116
    %v893 = vpop.permute.xlu0 %892
    %894 = vrot.lane.b32.xlu0 %v887, 116
    %v895 = vpop.permute.xlu0 %894
    %v898 = vrot.slane %v889, 1
    %v899 = vrot.slane %v889, 2
    %v900 = vrot.slane %v889, 3
    %v901 = vrot.slane %v889, 4
    %v902 = vrot.slane %v889, 5
    %v903 = vrot.slane %v889, 6
    %v904 = vrot.slane %v889, 7
    %v905 = vrot.slane %v891, 1
    %v906 = vrot.slane %v891, 2
    %v907 = vrot.slane %v891, 3
    %v908 = vrot.slane %v891, 4
    %v909 = vrot.slane %v891, 5
    %v910 = vrot.slane %v891, 6
    %v911 = vrot.slane %v891, 7
    %v930 = vrot.slane %v893, 1
    %v931 = vrot.slane %v893, 2
    %v932 = vrot.slane %v893, 3
    %v933 = vrot.slane %v893, 4
    %v934 = vrot.slane %v893, 5
    %v935 = vrot.slane %v893, 6
    %v936 = vrot.slane %v893, 7
    %v937 = vrot.slane %v895, 1
    %v938 = vrot.slane %v895, 2
    %v939 = vrot.slane %v895, 3
    %v940 = vrot.slane %v895, 4
    %v941 = vrot.slane %v895, 5
    %v942 = vrot.slane %v895, 6
    %v943 = vrot.slane %v895, 7
    %v960 = vsel %vm345, %v889, %v893
    %v961 = vsel %vm345, %v898, %v930
    %v962 = vsel %vm345, %v899, %v931
    %v963 = vsel %vm345, %v900, %v932
    %v964 = vsel %vm345, %v901, %v933
    %v965 = vsel %vm345, %v902, %v934
    %v966 = vsel %vm345, %v903, %v935
    %v967 = vsel %vm345, %v904, %v936
    %v968 = vsel %vm345, %v891, %v895
    %v969 = vsel %vm345, %v905, %v937
    %v970 = vsel %vm345, %v906, %v938
    %v971 = vsel %vm345, %v907, %v939
    %v972 = vsel %vm345, %v908, %v940
    %v973 = vsel %vm345, %v909, %v941
    %v974 = vsel %vm345, %v910, %v942
    %v975 = vsel %vm345, %v911, %v943
    %v992 = vrot.slane %v961, 7
    %v993 = vsel %vm160, %v992, %v960
    %v994 = vrot.slane %v962, 6
    %v995 = vsel %vm163, %v994, %v993
    %v996 = vrot.slane %v963, 5
    %v997 = vsel %vm166, %v996, %v995
    %v998 = vrot.slane %v964, 4
    %v999 = vsel %vm169, %v998, %v997
    %v1000 = vrot.slane %v965, 3
    %v1001 = vsel %vm172, %v1000, %v999
    %v1002 = vrot.slane %v966, 2
    %v1003 = vsel %vm175, %v1002, %v1001
    %v1004 = vrot.slane %v967, 1
    %v1005 = vsel %vm178, %v1004, %v1003
    %v1006 = vrot.slane %v969, 7
    %v1007 = vsel %vm160, %v1006, %v968
    %v1008 = vrot.slane %v970, 6
    %v1009 = vsel %vm163, %v1008, %v1007
    %v1010 = vrot.slane %v971, 5
    %v1011 = vsel %vm166, %v1010, %v1009
    %v1012 = vrot.slane %v972, 4
    %v1013 = vsel %vm169, %v1012, %v1011
    %v1014 = vrot.slane %v973, 3
    %v1015 = vsel %vm172, %v1014, %v1013
    %v1016 = vrot.slane %v974, 2
    %v1017 = vsel %vm175, %v1016, %v1015
    %v1018 = vrot.slane %v975, 1
    %v1019 = vsel %vm178, %v1018, %v1017
    %v1022 = vmin.f32 %v886, %v1005
    %v1023 = vmin.f32 %v887, %v1019
    %1024 = vrot.lane.b32.xlu0 %v1022, 8
    %v1025 = vpop.permute.xlu0 %1024
    %1026 = vrot.lane.b32.xlu0 %v1023, 8
    %v1027 = vpop.permute.xlu0 %1026
    %1028 = vrot.lane.b32.xlu0 %v1022, 120
    %v1029 = vpop.permute.xlu0 %1028
    %1030 = vrot.lane.b32.xlu0 %v1023, 120
    %v1031 = vpop.permute.xlu0 %1030
    %v1034 = vrot.slane %v1025, 1
    %v1035 = vrot.slane %v1025, 2
    %v1036 = vrot.slane %v1025, 3
    %v1037 = vrot.slane %v1025, 4
    %v1038 = vrot.slane %v1025, 5
    %v1039 = vrot.slane %v1025, 6
    %v1040 = vrot.slane %v1025, 7
    %v1041 = vrot.slane %v1027, 1
    %v1042 = vrot.slane %v1027, 2
    %v1043 = vrot.slane %v1027, 3
    %v1044 = vrot.slane %v1027, 4
    %v1045 = vrot.slane %v1027, 5
    %v1046 = vrot.slane %v1027, 6
    %v1047 = vrot.slane %v1027, 7
    %v1066 = vrot.slane %v1029, 1
    %v1067 = vrot.slane %v1029, 2
    %v1068 = vrot.slane %v1029, 3
    %v1069 = vrot.slane %v1029, 4
    %v1070 = vrot.slane %v1029, 5
    %v1071 = vrot.slane %v1029, 6
    %v1072 = vrot.slane %v1029, 7
    %v1073 = vrot.slane %v1031, 1
    %v1074 = vrot.slane %v1031, 2
    %v1075 = vrot.slane %v1031, 3
    %v1076 = vrot.slane %v1031, 4
    %v1077 = vrot.slane %v1031, 5
    %v1078 = vrot.slane %v1031, 6
    %v1079 = vrot.slane %v1031, 7
    %v1096 = vsel %vm483, %v1025, %v1029
    %v1097 = vsel %vm483, %v1034, %v1066
    %v1098 = vsel %vm483, %v1035, %v1067
    %v1099 = vsel %vm483, %v1036, %v1068
    %v1100 = vsel %vm483, %v1037, %v1069
    %v1101 = vsel %vm483, %v1038, %v1070
    %v1102 = vsel %vm483, %v1039, %v1071
    %v1103 = vsel %vm483, %v1040, %v1072
    %v1104 = vsel %vm483, %v1027, %v1031
    %v1105 = vsel %vm483, %v1041, %v1073
    %v1106 = vsel %vm483, %v1042, %v1074
    %v1107 = vsel %vm483, %v1043, %v1075
    %v1108 = vsel %vm483, %v1044, %v1076
    %v1109 = vsel %vm483, %v1045, %v1077
    %v1110 = vsel %vm483, %v1046, %v1078
    %v1111 = vsel %vm483, %v1047, %v1079
    %v1128 = vrot.slane %v1097, 7
    %v1129 = vsel %vm160, %v1128, %v1096
    %v1130 = vrot.slane %v1098, 6
    %v1131 = vsel %vm163, %v1130, %v1129
    %v1132 = vrot.slane %v1099, 5
    %v1133 = vsel %vm166, %v1132, %v1131
    %v1134 = vrot.slane %v1100, 4
    %v1135 = vsel %vm169, %v1134, %v1133
    %v1136 = vrot.slane %v1101, 3
    %v1137 = vsel %vm172, %v1136, %v1135
    %v1138 = vrot.slane %v1102, 2
    %v1139 = vsel %vm175, %v1138, %v1137
    %v1140 = vrot.slane %v1103, 1
    %v1141 = vsel %vm178, %v1140, %v1139
    %v1142 = vrot.slane %v1105, 7
    %v1143 = vsel %vm160, %v1142, %v1104
    %v1144 = vrot.slane %v1106, 6
    %v1145 = vsel %vm163, %v1144, %v1143
    %v1146 = vrot.slane %v1107, 5
    %v1147 = vsel %vm166, %v1146, %v1145
    %v1148 = vrot.slane %v1108, 4
    %v1149 = vsel %vm169, %v1148, %v1147
    %v1150 = vrot.slane %v1109, 3
    %v1151 = vsel %vm172, %v1150, %v1149
    %v1152 = vrot.slane %v1110, 2
    %v1153 = vsel %vm175, %v1152, %v1151
    %v1154 = vrot.slane %v1111, 1
    %v1155 = vsel %vm178, %v1154, %v1153
    %v1158 = vmin.f32 %v1022, %v1141
    %v1159 = vmin.f32 %v1023, %v1155
    %vm1160 = vcmp.eq.f32.partialorder %v52, %v1158
    %vm1161 = vcmp.eq.f32.partialorder %v52, %v1159
    %v1162 = vsel %vm1160, 1, 0
    %v1163 = vsel %vm1161, 1, 0
    %v1164 = vcvt.s32.f32 %v1162
    %v1165 = vcvt.s32.f32 %v1163
    %1166 = vst [vmem:[#allocation5] sm:$0xff] %v1164
    %1167 = vst [vmem:[#allocation5 + $0x8] sm:$0xff] %v1165
    // Predicated region
    $region10: #{tpu_custom_call.1} parent=1 // pred_check
      _
    $region11: #{tpu_custom_call.1} parent=1 // pred_check_branch
      %1169 = sbr.rel (0) target = $region13
    $region12: #{tpu_custom_call.1} parent=1 // pred_region
      %s1171 = ssub.s32 256, 256
      %1172 = vsyncadd [#allocation4], %s1171
      %s1173 = sshll.u32 [#allocation5], 4
      %s1174 = int_to_ptr.vmem [resolvable:$true] %s1173
      %1179 = dma.vmem_to_hbm [thread:$0]  %s1174, 256, %s1, [#allocation4], 128, 128, 8
    $region13: #{tpu_custom_call.1} parent=1 // pred_fallthru
      _
    // Predicated region
    $region14: #{tpu_custom_call.1} parent=1 // pred_check
      _
    $region15: #{tpu_custom_call.1} parent=1 // pred_check_branch
      %1181 = sbr.rel (0) target = $region17
    $region16: #{tpu_custom_call.1} parent=1 // pred_region
      %1182 = dma.done [#allocation4], 256
    $region17: #{tpu_custom_call.1} parent=1 // pred_fallthru
      _
    %1183 = vsyncpa [#allocation3], 1
    %1184 = vsyncpa [#allocation4], 1

</llo_original>
